<compile_context>
chip_gen: v5e
topology: v5e:2x2
jax: 0.10.0
libtpu: 0.0.40
codegen_flags: <defaults>
</compile_context>

<pallas_src>
import functools

import jax
import jax.numpy as jnp
from jax.experimental import pallas as pl
from jax.experimental.pallas import tpu as pltpu


# --------------------------------------------------------------------------
# Kernel bodies.  Block shape is (ct, H, W): W on lanes, H on sublanes.
# dh / dw / H / W are static Python ints baked in via functools.partial.
# --------------------------------------------------------------------------
def _roll_kernel_xlu(x_ref, o_ref, *, dh, dw):
    # Fully (8, 128)-aligned 32-bit path: both rolls on the XLU rotate slot.
    x = x_ref[...]
    if dw:
        x = pltpu.roll(x, dw, 2)      # lane rotate    == roll along W
    if dh:
        x = pltpu.roll(x, dh, 1)      # sublane rotate == roll along H
    o_ref[...] = x


def _roll_kernel_mixed(x_ref, o_ref, *, dh, dw, W):
    # H % 8 == 0 but W not lane-aligned (Swin widths): H-roll on the XLU,
    # W-roll as two static sliced stores directly into o_ref.
    x = x_ref[...]
    if dh:
        x = pltpu.roll(x, dh, 1)      # sublane rotate == roll along H
    if dw:
        o_ref[:, :, dw:] = x[:, :, : W - dw]
        o_ref[:, :, :dw] = x[:, :, W - dw:]
    else:
        o_ref[...] = x


def _roll_kernel_quadrants(x_ref, o_ref, *, dh, dw, H, W):
    # Fully generic 32-bit path: out[:, h, w] = x[:, (h-dh)%H, (w-dw)%W]
    # written as four static-sliced quadrant stores (no concat temporary).
    x = x_ref[...]
    if dh and dw:
        o_ref[:, dh:, dw:] = x[:, : H - dh, : W - dw]
        o_ref[:, :dh, dw:] = x[:, H - dh:, : W - dw]
        o_ref[:, dh:, :dw] = x[:, : H - dh, W - dw:]
        o_ref[:, :dh, :dw] = x[:, H - dh:, W - dw:]
    elif dh:
        o_ref[:, dh:, :] = x[:, : H - dh, :]
        o_ref[:, :dh, :] = x[:, H - dh:, :]
    elif dw:
        o_ref[:, :, dw:] = x[:, :, : W - dw]
        o_ref[:, :, :dw] = x[:, :, W - dw:]
    else:
        o_ref[...] = x


def _roll_kernel_packed(x_ref, o_ref, *, dh, dw):
    # Packed (sub-32-bit) dtypes: build the rolled block in registers and do
    # one full aligned store.  jnp.roll lowers to slice+concatenate, which
    # Mosaic handles for any packed dtype / offset.
    x = x_ref[...]
    if dh or dw:
        x = jnp.roll(x, shift=(dh, dw), axis=(1, 2))
    o_ref[...] = x


# --------------------------------------------------------------------------
# Wrapper.
# --------------------------------------------------------------------------
def _vmem_budget_bytes():
    """Scoped-VMEM default for the current TPU generation (conservative)."""
    try:
        kind = jax.devices()[0].device_kind.lower()
    except Exception:
        kind = ""
    if "v6" in kind or "v7" in kind or "trillium" in kind:
        return 32 * 1024 * 1024   # v6e / v7x scoped default
    return 16 * 1024 * 1024       # v5e and unknown generations


def cyclic_shift(x, disp):
    """Pallas TPU equivalent of CyclicShift(disp).forward(x) for NCHW x."""
    B, C, H, W = x.shape
    itemsize = jnp.dtype(x.dtype).itemsize

    # Static shift normalization (matches torch.roll's modulo for any disp).
    dh = disp % H
    dw = disp % W

    n = B * C

    # ---- block sizing: fill the generation's scoped VMEM ------------------
    # in + out are double-buffered -> 4 padded blocks live at once; keep
    # ~20% headroom for Mosaic internal scratch / vreg temporaries.
    target_block_bytes = _vmem_budget_bytes() // 5
    sub = 8 * (4 // itemsize) if itemsize in (1, 2, 4) else 8   # sublane tile
    h_pad = -(-H // sub) * sub
    w_pad = -(-W // 128) * 128
    slice_bytes = h_pad * w_pad * itemsize                       # padded VMEM
    ct = max(1, min(n, target_block_bytes // slice_bytes))
    # Grid-length floor: keep >= ~4 steps so the in/out DMAs actually
    # double-buffer and (on v7x) both TensorCores get work.
    ct = min(ct, max(1, -(-n // 4)))
    grid = (pl.cdiv(n, ct),)

    # ---- kernel body selection --------------------------------------------
    is_32bit = itemsize == 4
    if is_32bit and H % 8 == 0 and W % 128 == 0:
        body = functools.partial(_roll_kernel_xlu, dh=dh, dw=dw)
    elif is_32bit and H % 8 == 0:
        body = functools.partial(_roll_kernel_mixed, dh=dh, dw=dw, W=W)
    elif is_32bit:
        body = functools.partial(_roll_kernel_quadrants, dh=dh, dw=dw, H=H, W=W)
    else:
        body = functools.partial(_roll_kernel_packed, dh=dh, dw=dw)

    x_flat = x.reshape(n, H, W)
    out_flat = pl.pallas_call(
        body,
        out_shape=jax.ShapeDtypeStruct((n, H, W), x.dtype),
        grid_spec=pltpu.PrefetchScalarGridSpec(
            num_scalar_prefetch=0,
            grid=grid,
            in_specs=[pl.BlockSpec((ct, H, W), lambda i: (i, 0, 0))],
            out_specs=pl.BlockSpec((ct, H, W), lambda i: (i, 0, 0)),
        ),
        compiler_params=pltpu.CompilerParams(
            dimension_semantics=("parallel",),  # megacore-shard the grid (v7x)
        ),
        # Pure bandwidth op: one full HBM read + one full write, zero FLOPs.
        cost_estimate=pl.CostEstimate(
            flops=0,
            transcendentals=0,
            bytes_accessed=2 * x.size * itemsize,
        ),
    )(x_flat)
    return out_flat.reshape(B, C, H, W)


if __name__ == "__main__":
    key = jax.random.PRNGKey(0)

    # Cover every kernel body:
    #   (2,4,16, 16) fp32 : mixed path (H%8==0, W%128!=0)
    #   (2,4,16,256) fp32 : fully aligned XLU pltpu.roll path
    #   (1,3,56, 56) fp32 : Swin-like mixed path
    #   (1,8, 7,  7) fp32 : generic quadrant-store path (H%8!=0)
    #   (2,4,16, 16) bf16 : packed-dtype fallback path
    cases = [
        ((2, 4, 16, 16), jnp.float32, (3, -3, 0)),
        ((2, 4, 16, 256), jnp.float32, (3, -3)),
        ((1, 3, 56, 56), jnp.float32, (3, -3)),
        ((1, 8, 7, 7), jnp.float32, (3, -3)),
        ((2, 4, 16, 16), jnp.bfloat16, (3, -3)),
    ]
    for shape, dtype, disps in cases:
        key, sub = jax.random.split(key)
        x = jax.random.normal(sub, shape, dtype=jnp.float32).astype(dtype)
        for disp in disps:
            out = jax.block_until_ready(cyclic_shift(x, disp))
            ref = jnp.roll(x, shift=(disp, disp), axis=(2, 3))
            assert out.shape == ref.shape and out.dtype == ref.dtype, (
                f"shape/dtype mismatch for {shape} {dtype} disp={disp}")
            assert jnp.array_equal(out, ref), (
                f"value mismatch vs reference roll for {shape} {dtype} disp={disp}")

    print("KERNEL_OK")
</pallas_src>

<mosaic_0001>
module attributes {stable_mosaic.version = 11 : i64} {
  func.func @_roll_kernel_mixed(%arg0: i32, %arg1: memref<2x16x16xf32, #tpu.memory_space<vmem>>, %arg2: memref<2x16x16xf32, #tpu.memory_space<vmem>>) attributes {dimension_semantics = [#tpu.dimension_semantics<parallel>], iteration_bounds = array<i64: 4>, scalar_prefetch = 0 : i64, scratch_operands = 0 : i64, tpu.core_type = #tpu.core_type<tc>, window_params = [{transform_indices = @transform_0, window_bounds = array<i64: 2, 16, 16>}, {transform_indices = @transform_1, window_bounds = array<i64: 2, 16, 16>}]} {
    %c0 = arith.constant 0 : index
    %c0_0 = arith.constant 0 : index
    %c0_1 = arith.constant 0 : index
    %0 = vector.load %arg1[%c0, %c0_0, %c0_1] : memref<2x16x16xf32, #tpu.memory_space<vmem>>, vector<2x16x16xf32>
    %c3_i32 = arith.constant 3 : i32
    %1 = tpu.dynamic_rotate %0 by %c3_i32 dim 1 : vector<2x16x16xf32>, i32 -> vector<2x16x16xf32>
    %2 = vector.extract_strided_slice %1 {offsets = [0, 0, 0], sizes = [2, 16, 13], strides = [1, 1, 1]} : vector<2x16x16xf32> to vector<2x16x13xf32>
    %c0_2 = arith.constant 0 : index
    %c0_3 = arith.constant 0 : index
    %c3 = arith.constant 3 : index
    %3 = vector.load %arg2[%c0_2, %c0_3, %c3] : memref<2x16x16xf32, #tpu.memory_space<vmem>>, vector<2x16x13xf32>
    tpu.vector_store %arg2[%c0_2, %c0_3, %c3], %2 {strides = array<i32>} : memref<2x16x16xf32, #tpu.memory_space<vmem>>, vector<2x16x13xf32>,
    %4 = vector.extract_strided_slice %1 {offsets = [0, 0, 13], sizes = [2, 16, 3], strides = [1, 1, 1]} : vector<2x16x16xf32> to vector<2x16x3xf32>
    %c0_4 = arith.constant 0 : index
    %c0_5 = arith.constant 0 : index
    %c0_6 = arith.constant 0 : index
    %5 = vector.load %arg2[%c0_4, %c0_5, %c0_6] : memref<2x16x16xf32, #tpu.memory_space<vmem>>, vector<2x16x3xf32>
    tpu.vector_store %arg2[%c0_4, %c0_5, %c0_6], %4 {strides = array<i32>} : memref<2x16x16xf32, #tpu.memory_space<vmem>>, vector<2x16x3xf32>,
    return
  }
  func.func @transform_0(%arg0: i32) -> (i32, i32, i32) {
    %c0_i32 = arith.constant 0 : i32
    %c0_i32_0 = arith.constant 0 : i32
    %c0_i32_1 = arith.constant 0 : i32
    return %arg0, %c0_i32, %c0_i32_0 : i32, i32, i32
  }
  func.func @transform_1(%arg0: i32) -> (i32, i32, i32) {
    %c0_i32 = arith.constant 0 : i32
    %c0_i32_0 = arith.constant 0 : i32
    %c0_i32_1 = arith.constant 0 : i32
    return %arg0, %c0_i32, %c0_i32_0 : i32, i32, i32
  }
}

</mosaic_0001>

<llo_original>
// kernel: tpu_custom_call.1
$region0: #{tpu_custom_call.1}
  #allocation0 [shape = 'u32[]', space=smem, size = 0x4, offset = 0x4, fixed_abs, tag = 'smem constant byte address 0x4 - core index']
  #allocation1 [shape = 'u32[72,128]{1,0:T(1,128)}', space=vmem, size = 0x9000, scoped, tag = 'internal scratch']
  %s0 = inlined_call_operand.hbm [shape: f32[8,16,16], index: 0, kind: input, shape index: {}]
  %s1 = inlined_call_operand.hbm [shape: f32[8,16,16], index: 1, kind: output, shape index: {}]
  %s2 = sld [smem:[#allocation0]]
  $region41: #{tpu_custom_call.1} parent=0
    _
  %s4 = ssub.s32 1, %s2
  %s5 = scalar_select 0, %s4, %s2
  $region1: #{tpu_custom_call.1} parent=0
    #allocation2 [shape = 'u8[32768]{0}', space=vmem, size = 0x8000, scoped, tag = 'input window, operand 0']
    #allocation3 [shape = 's32[2]{0}', space=sflag, size = 0x8, scoped, tag = 'scoped memory for tpu_custom_call.1']
    #allocation4 [shape = 's32[2]{0}', space=sflag, size = 0x8, scoped, tag = 'scoped memory for tpu_custom_call.1']
    #allocation5 [shape = 'u8[32768]{0}', space=vmem, size = 0x8000, scoped, tag = 'output window, operand 0']
    %6 = vsyncpa [#allocation3], 0
    %s7 = scalar_lea.sflag [#allocation3], 1
    %8 = vsyncpa %s7, 0
    %9 = vsyncpa [#allocation4], 0
    %s10 = scalar_lea.sflag [#allocation4], 1
    %11 = vsyncpa %s10, 0
    loop: start=0, step=1, limit=6
    $region2: #{tpu_custom_call.1} parent=1 // loop_pre_header
      _
    $region3: #{tpu_custom_call.1} parent=1 // loop_header
      %s13 = sphi 0, %s17
      %p14 = scmp.ge.s32.totalorder %s13, 6
      %s23 = sphi 0, %s25
      %s26 = sphi 0, %s23
      %s27 = sphi 0, %s26
      %s43 = sphi 0, %s27
      %s49 = sphi 0, %s51
      %s52 = sphi 0, %s49
      %s53 = sphi 0, %s52
      %s69 = sphi 0, %s53
    $region4: #{tpu_custom_call.1} parent=1 // loop_header_branch
      %16 = sbr.rel (%p14) target = $region8
    $region5: #{tpu_custom_call.1} parent=1 // loop_body
      %s18 = ssub.s32 %s13, 1
      %s19 = ssub.s32 %s13, 2
      %s20 = sadd.s32 %s13, 1
      %s21 = ssub.s32 %s13, %s20
      %p22 = scmp.eq.s32.totalorder %s21, 0
      %s24 = sadd.s32 %s23, 1
      %s25 = scalar_select %p22, %s23, %s24
      %p28 = pneg %p22
      %p29 = scmp.eq.s32.totalorder %s13, 3
      %p30 = por %p28, %p29
      %p31 = scmp.ne.s32.totalorder %s23, %s26
      %p32 = scmp.eq.s32.totalorder %s13, 0
      %p33 = por %p31, %p32
      %p34 = scmp.ne.s32.totalorder %s23, %s26
      %p35 = scmp.eq.s32.totalorder %s18, 3
      %p36 = por %p34, %p35
      %p37 = scmp.ne.s32.totalorder %s26, %s27
      %p38 = scmp.eq.s32.totalorder %s18, 0
      %p39 = por %p37, %p38
      %p40 = scmp.ne.s32.totalorder %s26, %s27
      %p41 = scmp.eq.s32.totalorder %s19, 3
      %p42 = por %p40, %p41
      %p44 = scmp.ne.s32.totalorder %s27, %s43
      %p45 = scmp.eq.s32.totalorder %s19, 0
      %p46 = por %p44, %p45
      %s47 = ssub.s32 %s13, %s20
      %p48 = scmp.eq.s32.totalorder %s47, 0
      %s50 = sadd.s32 %s49, 1
      %s51 = scalar_select %p48, %s49, %s50
      %p54 = pneg %p48
      %p55 = scmp.eq.s32.totalorder %s13, 3
      %p56 = por %p54, %p55
      %p57 = scmp.ne.s32.totalorder %s49, %s52
      %p58 = scmp.eq.s32.totalorder %s13, 0
      %p59 = por %p57, %p58
      %p60 = scmp.ne.s32.totalorder %s49, %s52
      %p61 = scmp.eq.s32.totalorder %s18, 3
      %p62 = por %p60, %p61
      %p63 = scmp.ne.s32.totalorder %s52, %s53
      %p64 = scmp.eq.s32.totalorder %s18, 0
      %p65 = por %p63, %p64
      %p66 = scmp.ne.s32.totalorder %s52, %s53
      %p67 = scmp.eq.s32.totalorder %s19, 3
      %p68 = por %p66, %p67
      %p70 = scmp.ne.s32.totalorder %s53, %s69
      %p71 = scmp.eq.s32.totalorder %s19, 0
      %p72 = por %p70, %p71
      %p73 = scmp.le.s32.totalorder 1, %s13
      %p74 = scmp.lt.s32.totalorder %s13, 5
      %p75 = pnand %p73, %p74
      %p76 = pneg %p75
      // Predicated region
      $region9: #{tpu_custom_call.1} parent=5 // pred_check
        _
      $region10: #{tpu_custom_call.1} parent=5 // pred_check_branch
        %78 = sbr.rel (%p75) target = $region12
      $region11: #{tpu_custom_call.1} parent=5 // pred_region
        %s79 = ssub.s32 %s13, 1
      $region12: #{tpu_custom_call.1} parent=5 // pred_fallthru
        _
      %p80 = scmp.lt.s32.totalorder %s13, 4
      // Predicated region
      $region13: #{tpu_custom_call.1} parent=5 // pred_check
        %p81 = pneg %p80
      $region14: #{tpu_custom_call.1} parent=5 // pred_check_branch
        %83 = sbr.rel (%p81) target = $region16
      $region15: #{tpu_custom_call.1} parent=5 // pred_region
        // Predicated region
        $region17: #{tpu_custom_call.1} parent=15 // pred_check
          %p84 = pneg %p33
        $region18: #{tpu_custom_call.1} parent=15 // pred_check_branch
          %86 = sbr.rel (%p84) target = $region20
        $region19: #{tpu_custom_call.1} parent=15 // pred_region
          %s87 = sand.u32 %s23, 1
          %s88 = scalar_lea.sflag [#allocation3], %s87
          %s89 = sand.u32 %s23, 1
          %s90 = smul.addr %s89, 32
          %s91 = scalar_lea.vmem [#allocation2], %s90
          %s92 = smul.u32 2, %s13
          %94 = vsyncadd %s88, 0
          %s95 = smul.addr %s92, 2
          %s96 = smul.addr %s95, 8
          %s97 = scalar_lea.hbm %s0, %s96
          %s98 = sshll.u32 %s97, 4
          %s99 = int_to_ptr.hbm [resolvable:$true] %s98
          %s100 = sshll.u32 %s91, 4
          %s101 = int_to_ptr.vmem [resolvable:$true] %s100
          %106 = dma.hbm_to_vmem [thread:$0]  %s99, 512, %s101, %s88, 128, 128, 8
        $region20: #{tpu_custom_call.1} parent=15 // pred_fallthru
          _
      $region16: #{tpu_custom_call.1} parent=5 // pred_fallthru
        _
      %p107 = scmp.le.s32.totalorder 1, %s13
      %p108 = scmp.lt.s32.totalorder %s13, 5
      %p109 = pnand %p107, %p108
      %p110 = pneg %p109
      // Predicated region
      $region21: #{tpu_custom_call.1} parent=5 // pred_check
        _
      $region22: #{tpu_custom_call.1} parent=5 // pred_check_branch
        %112 = sbr.rel (%p109) target = $region24
      $region23: #{tpu_custom_call.1} parent=5 // pred_region
        %s113 = ssub.s32 %s13, 1
        %s114 = sand.u32 %s26, 1
        %s115 = scalar_lea.sflag [#allocation3], %s114
        %s116 = sand.u32 %s26, 1
        %s117 = smul.addr %s116, 32
        %s118 = scalar_lea.vmem [#allocation2], %s117
        // Predicated region
        $region25: #{tpu_custom_call.1} parent=23 // pred_check
          %p119 = pneg %p39
        $region26: #{tpu_custom_call.1} parent=23 // pred_check_branch
          %121 = sbr.rel (%p119) target = $region28
        $region27: #{tpu_custom_call.1} parent=23 // pred_region
          %123 = dma.done %s115, 512
        $region28: #{tpu_custom_call.1} parent=23 // pred_fallthru
          _
        %s124 = sand.u32 %s26, 1
        %s125 = scalar_lea.sflag [#allocation3], %s124
        %s126 = sand.u32 %s26, 1
        %s127 = smul.addr %s126, 32
        %s128 = scalar_lea.vmem [#allocation2], %s127
        %p129 = pneg %p39
        %p130 = pneg %p36
        %p131 = pneg %p65
        %p132 = pneg %p62
        %s133 = sand.u32 %s52, 1
        %s134 = scalar_lea.sflag [#allocation4], %s133
        %s135 = sand.u32 %s52, 1
        %s136 = smul.addr %s135, 32
        %s137 = scalar_lea.vmem [#allocation5], %s136
        %s138 = smul.u32 2, %s18
        %s139 = smul.u32 2, %s18
        %v140 = vld [vmem:[%s118] sm:$0xff]
        %v141 = vld [vmem:[%s118 + $0x8] sm:$0xff]
        %v142 = vld [vmem:[%s118 + $0x10] sm:$0xff]
        %v143 = vld [vmem:[%s118 + $0x18] sm:$0xff]
        %v144 = vrot.slane %v140, 5
        %v145 = vrot.slane %v142, 5
        %v146 = vrot.slane %v141, 5
        %v147 = vrot.slane %v143, 5
        %v148 = vlaneseq
        %v149 = vshrl.u32 %v148, 7
        %vm150 = vcmp.lt.s32.totalorder %v149, 3
        %v151 = vsel %vm150, %v144, %v146
        %v152 = vsel %vm150, %v145, %v147
        %v153 = vsel %vm150, %v146, %v144
        %v154 = vsel %vm150, %v147, %v145
        %159 = vrot.lane.b32.xlu0 %v153, 3
        %v160 = vpop.permute.xlu0 %159
        %161 = vrot.lane.b32.xlu0 %v151, 3
        %v162 = vpop.permute.xlu0 %161
        %163 = vrot.lane.b32.xlu0 %v154, 3
        %v164 = vpop.permute.xlu0 %163
        %165 = vrot.lane.b32.xlu0 %v152, 3
        %v166 = vpop.permute.xlu0 %165
        %vm171 = vcmask 130072
        %172 = vst.msk [vmem:[%s137] sm:$0xff] %vm171, %v160
        %173 = vst.msk [vmem:[%s137 + $0x8] sm:$0xff] %vm171, %v162
        %174 = vst.msk [vmem:[%s137 + $0x10] sm:$0xff] %vm171, %v164
        %175 = vst.msk [vmem:[%s137 + $0x18] sm:$0xff] %vm171, %v166
        %176 = vrot.lane.b32.xlu0 %v153, 115
        %v177 = vpop.permute.xlu0 %176
        %178 = vrot.lane.b32.xlu0 %v151, 115
        %v179 = vpop.permute.xlu0 %178
        %180 = vrot.lane.b32.xlu0 %v154, 115
        %v181 = vpop.permute.xlu0 %180
        %182 = vrot.lane.b32.xlu0 %v152, 115
        %v183 = vpop.permute.xlu0 %182
        %vm188 = vcmask 23552
        %189 = vst.msk [vmem:[%s137] sm:$0xff] %vm188, %v177
        %190 = vst.msk [vmem:[%s137 + $0x8] sm:$0xff] %vm188, %v179
        %191 = vst.msk [vmem:[%s137 + $0x10] sm:$0xff] %vm188, %v181
        %192 = vst.msk [vmem:[%s137 + $0x18] sm:$0xff] %vm188, %v183
        %s193 = sand.u32 %s52, 1
        %s194 = scalar_lea.sflag [#allocation4], %s193
        %s195 = sand.u32 %s52, 1
        %s196 = smul.addr %s195, 32
        %s197 = scalar_lea.vmem [#allocation5], %s196
        // Predicated region
        $region29: #{tpu_custom_call.1} parent=23 // pred_check
          %p198 = pneg %p62
        $region30: #{tpu_custom_call.1} parent=23 // pred_check_branch
          %200 = sbr.rel (%p198) target = $region32
        $region31: #{tpu_custom_call.1} parent=23 // pred_region
          %s201 = smul.u32 2, %s18
          %203 = vsyncadd %s194, 0
          %s204 = smul.addr %s201, 2
          %s205 = smul.addr %s204, 8
          %s206 = scalar_lea.hbm %s1, %s205
          %s207 = sshll.u32 %s197, 4
          %s208 = int_to_ptr.vmem [resolvable:$true] %s207
          %s209 = sshll.u32 %s206, 4
          %s210 = int_to_ptr.hbm [resolvable:$true] %s209
          %215 = dma.vmem_to_hbm [thread:$0]  %s208, 512, %s210, %s194, 128, 128, 8
        $region32: #{tpu_custom_call.1} parent=23 // pred_fallthru
          _
      $region24: #{tpu_custom_call.1} parent=5 // pred_fallthru
        _
      %p216 = scmp.le.s32.totalorder 2, %s13
      // Predicated region
      $region33: #{tpu_custom_call.1} parent=5 // pred_check
        %p217 = pneg %p216
      $region34: #{tpu_custom_call.1} parent=5 // pred_check_branch
        %219 = sbr.rel (%p217) target = $region36
      $region35: #{tpu_custom_call.1} parent=5 // pred_region
        %s220 = ssub.s32 %s13, 2
        // Predicated region
        $region37: #{tpu_custom_call.1} parent=35 // pred_check
          %p221 = pneg %p68
        $region38: #{tpu_custom_call.1} parent=35 // pred_check_branch
          %223 = sbr.rel (%p221) target = $region40
        $region39: #{tpu_custom_call.1} parent=35 // pred_region
          %s224 = sand.u32 %s53, 1
          %s225 = scalar_lea.sflag [#allocation4], %s224
          %s226 = sand.u32 %s53, 1
          %s227 = smul.addr %s226, 32
          %s228 = scalar_lea.vmem [#allocation5], %s227
          %230 = dma.done %s225, 512
        $region40: #{tpu_custom_call.1} parent=35 // pred_fallthru
          _
      $region36: #{tpu_custom_call.1} parent=5 // pred_fallthru
        _
    $region6: #{tpu_custom_call.1} parent=1 // loop_footer
      %s17 = sadd.s32 1, %s13
    $region7: #{tpu_custom_call.1} parent=1 // loop_footer_branch
      %12 = sbr.rel target = $region3
    $region8: #{tpu_custom_call.1} parent=1 // loop_exit
      _
    %231 = vsyncpa [#allocation3], 1
    %s232 = scalar_lea.sflag [#allocation3], 1
    %233 = vsyncpa %s232, 1
    %234 = vsyncpa [#allocation4], 1
    %s235 = scalar_lea.sflag [#allocation4], 1
    %236 = vsyncpa %s235, 1

</llo_original>
